<compile_context>
chip_gen: v7x
topology: tpu7x:2x2x1
jax: 0.10.0
libtpu: 0.0.40
codegen_flags: <defaults>
</compile_context>

<pallas_src>
import jax
import jax.numpy as jnp
from jax.experimental import pallas as pl
from jax.experimental.pallas import tpu as pltpu


def _interp_matrix(n_in: int, stride: int, dtype=jnp.float32) -> jnp.ndarray:
    """Row-stochastic (n_out, n_in) matrix of 'match centers' linear weights."""
    n_out = (n_in - 1) * stride + 1
    pos = jnp.arange(n_out, dtype=jnp.float32) / float(stride)   # source coord
    lo = jnp.floor(pos).astype(jnp.int32)
    frac = pos - lo.astype(jnp.float32)
    hi = jnp.minimum(lo + 1, n_in - 1)
    rows = jnp.arange(n_out)
    m = jnp.zeros((n_out, n_in), dtype)
    m = m.at[rows, lo].add((1.0 - frac).astype(dtype))
    m = m.at[rows, hi].add(frac.astype(dtype))
    return m


def _upscale_kernel(x_ref, a_ref, bt_ref, o_ref):
    # x_ref : (CB, H, W)          input channel block, native dtype
    # a_ref : (H_out, H)          row-interpolation weights
    # bt_ref: (W, W_out)          column-interpolation weights, pre-transposed
    # o_ref : (CB, H_out, W_out)  output channel block
    cb, h, w = x_ref.shape
    h_out = a_ref.shape[0]
    w_out = bt_ref.shape[1]

    x = x_ref[...]                                    # (CB, H, W)
    a = a_ref[...]                                    # (H_out, H)
    bt = bt_ref[...]                                  # (W, W_out)

    # Width pass: single collapsed GEMM over all channels of the block.
    t = jnp.dot(x.reshape(cb * h, w), bt,
                preferred_element_type=jnp.float32)   # (CB*H, W_out)
    t = t.astype(x.dtype).reshape(cb, h, w_out)       # keep MXU-native for bf16

    # Height pass: batched matmul (batch = channel); output lands directly in
    # (CB, H_out, W_out) layout -- no transposes needed.
    a_b = jnp.broadcast_to(a, (cb, h_out, h))         # tiny, once per grid step
    y = jax.lax.dot_general(
        a_b, t,
        dimension_numbers=(((2,), (1,)), ((0,), (0,))),
        preferred_element_type=jnp.float32)           # (CB, H_out, W_out)

    o_ref[...] = y.astype(o_ref.dtype)


def _pick_channel_block(nc, h, w, h_out, w_out, itemsize, target_bytes=2 << 20):
    """Channels per grid step: big enough to amortize per-step overhead and
    grow DMA/store slabs, small enough that the double-buffered tiles plus the
    in-kernel intermediates fit the default scoped VMEM on every generation
    (v7x has only 64 MiB total)."""
    # input + f32 intermediate + broadcast A + output, all per channel.
    per_plane = (h * w + h * w_out + h_out * h + h_out * w_out) * itemsize
    cb = int(max(1, min(nc, target_bytes // max(per_plane, 1))))
    if nc >= 2:
        # Keep at least 2 grid steps so v7x's two TensorCores can split the
        # "parallel" NC axis.
        cb = max(1, min(cb, nc // 2))
    while nc % cb:                      # must evenly tile the channel axis
        cb -= 1
    return cb


def upscale2d(x: jnp.ndarray, stride: int = 2) -> jnp.ndarray:
    """Pallas TPU implementation of rajo's Upscale2d.forward (NCHW)."""
    n, c, h, w = x.shape
    h_out = (h - 1) * stride + 1
    w_out = (w - 1) * stride + 1
    nc = n * c

    wdtype = x.dtype if jnp.issubdtype(x.dtype, jnp.floating) else jnp.float32
    a = _interp_matrix(h, stride, wdtype)        # (H_out, H)
    bt = _interp_matrix(w, stride, wdtype).T     # (W, W_out), pre-transposed

    x_flat = x.reshape(nc, h, w)
    itemsize = jnp.dtype(x.dtype).itemsize
    cb = _pick_channel_block(nc, h, w, h_out, w_out, max(itemsize, 4))

    flops = 2 * nc * (h * w * w_out + h_out * h * w_out)
    bytes_accessed = (nc * h * w + nc * h_out * w_out) * itemsize \
        + (h_out * h + w * w_out) * jnp.dtype(wdtype).itemsize

    out_flat = pl.pallas_call(
        _upscale_kernel,
        out_shape=jax.ShapeDtypeStruct((nc, h_out, w_out), x.dtype),
        grid=(nc // cb,),
        in_specs=[
            pl.BlockSpec((cb, h, w), lambda i: (i, 0, 0)),
            pl.BlockSpec((h_out, h), lambda i: (0, 0)),
            pl.BlockSpec((w, w_out), lambda i: (0, 0)),
        ],
        out_specs=pl.BlockSpec((cb, h_out, w_out), lambda i: (i, 0, 0)),
        compiler_params=pltpu.CompilerParams(
            dimension_semantics=("parallel",)),
        cost_estimate=pl.CostEstimate(
            flops=flops, transcendentals=0, bytes_accessed=bytes_accessed),
    )(x_flat, a, bt)

    return out_flat.reshape(n, c, h_out, w_out)


def _upscale2d_ref(x: jnp.ndarray, stride: int = 2) -> jnp.ndarray:
    """Plain-JAX reference for sanity checking."""
    n, c, h, w = x.shape
    a = _interp_matrix(h, stride)
    b = _interp_matrix(w, stride)
    y = jnp.einsum('op,ncpq->ncoq', a, x.astype(jnp.float32))
    y = jnp.einsum('rq,ncoq->ncor', b, y)
    return y.astype(x.dtype)


if __name__ == "__main__":
    key = jax.random.PRNGKey(0)
    x = jax.random.normal(key, (2, 4, 16, 16), dtype=jnp.float32)

    stride = 2
    out = upscale2d(x, stride)
    out = jax.block_until_ready(out)

    assert out.shape == (2, 4, 31, 31), out.shape
    ref = _upscale2d_ref(x, stride)
    assert jnp.allclose(out, ref, atol=1e-5, rtol=1e-5)

    print("KERNEL_OK")
</pallas_src>

<mosaic_0001>
module attributes {stable_mosaic.version = 11 : i64} {
  func.func @_upscale_kernel(%arg0: i32, %arg1: memref<4x16x16xf32, #tpu.memory_space<vmem>>, %arg2: memref<31x16xf32, #tpu.memory_space<vmem>>, %arg3: memref<16x31xf32, #tpu.memory_space<vmem>>, %arg4: memref<4x31x31xf32, #tpu.memory_space<vmem>>) attributes {dimension_semantics = [#tpu.dimension_semantics<parallel>], iteration_bounds = array<i64: 2>, scalar_prefetch = 0 : i64, scratch_operands = 0 : i64, tpu.core_type = #tpu.core_type<tc>, window_params = [{transform_indices = @transform_0, window_bounds = array<i64: 4, 16, 16>}, {pipeline_mode = #tpu.pipeline_mode<synchronous>, transform_indices = @transform_1, window_bounds = array<i64: 31, 16>}, {pipeline_mode = #tpu.pipeline_mode<synchronous>, transform_indices = @transform_2, window_bounds = array<i64: 16, 31>}, {transform_indices = @transform_3, window_bounds = array<i64: 4, 31, 31>}]} {
    %c0 = arith.constant 0 : index
    %c0_0 = arith.constant 0 : index
    %c0_1 = arith.constant 0 : index
    %0 = vector.load %arg1[%c0, %c0_0, %c0_1] : memref<4x16x16xf32, #tpu.memory_space<vmem>>, vector<4x16x16xf32>
    %c0_2 = arith.constant 0 : index
    %c0_3 = arith.constant 0 : index
    %1 = vector.load %arg2[%c0_2, %c0_3] : memref<31x16xf32, #tpu.memory_space<vmem>>, vector<31x16xf32>
    %c0_4 = arith.constant 0 : index
    %c0_5 = arith.constant 0 : index
    %2 = vector.load %arg3[%c0_4, %c0_5] : memref<16x31xf32, #tpu.memory_space<vmem>>, vector<16x31xf32>
    %3 = vector.shape_cast %0 : vector<4x16x16xf32> to vector<64x16xf32>
    %cst = arith.constant dense<0.000000e+00> : vector<64x31xf32>
    %4 = tpu.matmul %3, %2, %cst {dimension_numbers = #tpu.dot_dimension_numbers<[1], [0], [0], [1], [0, 0, 1, 1], [], []>} : vector<64x16xf32>, vector<16x31xf32>, vector<64x31xf32> -> vector<64x31xf32>
    %5 = vector.shape_cast %4 : vector<64x31xf32> to vector<4x16x31xf32>
    %6 = vector.shape_cast %1 : vector<31x16xf32> to vector<1x31x16xf32>
    %7 = vector.broadcast %6 : vector<1x31x16xf32> to vector<4x31x16xf32>
    %cst_6 = arith.constant dense<0.000000e+00> : vector<4x31x31xf32>
    %8 = tpu.matmul %7, %5, %cst_6 {dimension_numbers = #tpu.dot_dimension_numbers<[2], [1], [1], [2], [0, 0, 0, 1, 1, 2], [0], [0]>} : vector<4x31x16xf32>, vector<4x16x31xf32>, vector<4x31x31xf32> -> vector<4x31x31xf32>
    %c0_7 = arith.constant 0 : index
    %c0_8 = arith.constant 0 : index
    %c0_9 = arith.constant 0 : index
    %9 = vector.load %arg4[%c0_7, %c0_8, %c0_9] : memref<4x31x31xf32, #tpu.memory_space<vmem>>, vector<4x31x31xf32>
    tpu.vector_store %arg4[%c0_7, %c0_8, %c0_9], %8 {strides = array<i32>} : memref<4x31x31xf32, #tpu.memory_space<vmem>>, vector<4x31x31xf32>,
    return
  }
  func.func @transform_0(%arg0: i32) -> (i32, i32, i32) {
    %c0_i32 = arith.constant 0 : i32
    %c0_i32_0 = arith.constant 0 : i32
    %c0_i32_1 = arith.constant 0 : i32
    return %arg0, %c0_i32, %c0_i32_0 : i32, i32, i32
  }
  func.func @transform_1(%arg0: i32) -> (i32, i32) {
    %c0_i32 = arith.constant 0 : i32
    %c0_i32_0 = arith.constant 0 : i32
    %c0_i32_1 = arith.constant 0 : i32
    return %c0_i32, %c0_i32_0 : i32, i32
  }
  func.func @transform_2(%arg0: i32) -> (i32, i32) {
    %c0_i32 = arith.constant 0 : i32
    %c0_i32_0 = arith.constant 0 : i32
    %c0_i32_1 = arith.constant 0 : i32
    return %c0_i32, %c0_i32_0 : i32, i32
  }
  func.func @transform_3(%arg0: i32) -> (i32, i32, i32) {
    %c0_i32 = arith.constant 0 : i32
    %c0_i32_0 = arith.constant 0 : i32
    %c0_i32_1 = arith.constant 0 : i32
    return %arg0, %c0_i32, %c0_i32_0 : i32, i32, i32
  }
}

</mosaic_0001>

<llo_original>
// kernel: tpu_custom_call.1
$region0: #{tpu_custom_call.1}
  #allocation0 [shape = 'u32[]', space=smem, size = 0x4, offset = 0x4, fixed_abs, tag = 'smem constant byte address 0x4 - core index']
  #allocation1 [shape = 'u32[144,128]{1,0:T(1,128)}', space=vmem, size = 0x12000, scoped, tag = 'internal scratch']
  %s0 = inlined_call_operand.hbm [shape: f32[8,16,16], index: 0, kind: input, shape index: {}]
  %s1 = inlined_call_operand.vmem [shape: f32[31,16], index: 1, kind: input, shape index: {}]
  %s2 = inlined_call_operand.vmem [shape: f32[16,31], index: 2, kind: input, shape index: {}]
  %s3 = inlined_call_operand.vmem [shape: f32[8,31,31], index: 3, kind: output, shape index: {}]
  %s4 = sld [smem:[#allocation0]]
  $region49: #{tpu_custom_call.1} parent=0
    _
  %s6 = ssub.s32 1, %s4
  %s7 = scalar_select 0, %s6, %s4
  $region1: #{tpu_custom_call.1} parent=0
    #allocation2 [shape = 'u8[65536]{0}', space=vmem, size = 0x10000, scoped, tag = 'input window, operand 0']
    #allocation3 [shape = 's32[2]{0}', space=sflag, size = 0x8, scoped, tag = 'scoped memory for tpu_custom_call.1']
    %8 = vsyncpa [#allocation3], 0
    %s9 = scalar_lea.sflag [#allocation3], 1
    %10 = vsyncpa %s9, 0
    loop: start=0, step=1, limit=4
    $region2: #{tpu_custom_call.1} parent=1 // loop_pre_header
      _
    $region3: #{tpu_custom_call.1} parent=1 // loop_header
      %s12 = sphi 0, %s16
      %p13 = scmp.ge.s32.totalorder %s12, 4
      %s22 = sphi 0, %s24
      %s25 = sphi 0, %s22
      %s26 = sphi 0, %s25
      %s42 = sphi 0, %s26
      %s46 = sphi 0, %s46
      %s48 = sphi 0, %s46
      %s49 = sphi 0, %s48
      %s63 = sphi 0, %s49
      %s67 = sphi 0, %s67
      %s69 = sphi 0, %s67
      %s70 = sphi 0, %s69
      %s84 = sphi 0, %s70
      %s90 = sphi 0, %s92
      %s93 = sphi 0, %s90
      %s94 = sphi 0, %s93
      %s110 = sphi 0, %s94
    $region4: #{tpu_custom_call.1} parent=1 // loop_header_branch
      %15 = sbr.rel (%p13) target = $region8
    $region5: #{tpu_custom_call.1} parent=1 // loop_body
      %s17 = ssub.s32 %s12, 1
      %s18 = ssub.s32 %s12, 2
      %s19 = sadd.s32 %s12, 1
      %s20 = ssub.s32 %s12, %s19
      %p21 = scmp.eq.s32.totalorder %s20, 0
      %s23 = sadd.s32 %s22, 1
      %s24 = scalar_select %p21, %s22, %s23
      %p27 = pneg %p21
      %p28 = scmp.eq.s32.totalorder %s12, 1
      %p29 = por %p27, %p28
      %p30 = scmp.ne.s32.totalorder %s22, %s25
      %p31 = scmp.eq.s32.totalorder %s12, 0
      %p32 = por %p30, %p31
      %p33 = scmp.ne.s32.totalorder %s22, %s25
      %p34 = scmp.eq.s32.totalorder %s17, 1
      %p35 = por %p33, %p34
      %p36 = scmp.ne.s32.totalorder %s25, %s26
      %p37 = scmp.eq.s32.totalorder %s17, 0
      %p38 = por %p36, %p37
      %p39 = scmp.ne.s32.totalorder %s25, %s26
      %p40 = scmp.eq.s32.totalorder %s18, 1
      %p41 = por %p39, %p40
      %p43 = scmp.ne.s32.totalorder %s26, %s42
      %p44 = scmp.eq.s32.totalorder %s18, 0
      %p45 = por %p43, %p44
      %s47 = sadd.s32 %s46, 1
      %p50 = scmp.eq.s32.totalorder %s12, 1
      %p51 = scmp.ne.s32.totalorder %s46, %s48
      %p52 = scmp.eq.s32.totalorder %s12, 0
      %p53 = por %p51, %p52
      %p54 = scmp.ne.s32.totalorder %s46, %s48
      %p55 = scmp.eq.s32.totalorder %s17, 1
      %p56 = por %p54, %p55
      %p57 = scmp.ne.s32.totalorder %s48, %s49
      %p58 = scmp.eq.s32.totalorder %s17, 0
      %p59 = por %p57, %p58
      %p60 = scmp.ne.s32.totalorder %s48, %s49
      %p61 = scmp.eq.s32.totalorder %s18, 1
      %p62 = por %p60, %p61
      %p64 = scmp.ne.s32.totalorder %s49, %s63
      %p65 = scmp.eq.s32.totalorder %s18, 0
      %p66 = por %p64, %p65
      %s68 = sadd.s32 %s67, 1
      %p71 = scmp.eq.s32.totalorder %s12, 1
      %p72 = scmp.ne.s32.totalorder %s67, %s69
      %p73 = scmp.eq.s32.totalorder %s12, 0
      %p74 = por %p72, %p73
      %p75 = scmp.ne.s32.totalorder %s67, %s69
      %p76 = scmp.eq.s32.totalorder %s17, 1
      %p77 = por %p75, %p76
      %p78 = scmp.ne.s32.totalorder %s69, %s70
      %p79 = scmp.eq.s32.totalorder %s17, 0
      %p80 = por %p78, %p79
      %p81 = scmp.ne.s32.totalorder %s69, %s70
      %p82 = scmp.eq.s32.totalorder %s18, 1
      %p83 = por %p81, %p82
      %p85 = scmp.ne.s32.totalorder %s70, %s84
      %p86 = scmp.eq.s32.totalorder %s18, 0
      %p87 = por %p85, %p86
      %s88 = ssub.s32 %s12, %s19
      %p89 = scmp.eq.s32.totalorder %s88, 0
      %s91 = sadd.s32 %s90, 1
      %s92 = scalar_select %p89, %s90, %s91
      %p95 = pneg %p89
      %p96 = scmp.eq.s32.totalorder %s12, 1
      %p97 = por %p95, %p96
      %p98 = scmp.ne.s32.totalorder %s90, %s93
      %p99 = scmp.eq.s32.totalorder %s12, 0
      %p100 = por %p98, %p99
      %p101 = scmp.ne.s32.totalorder %s90, %s93
      %p102 = scmp.eq.s32.totalorder %s17, 1
      %p103 = por %p101, %p102
      %p104 = scmp.ne.s32.totalorder %s93, %s94
      %p105 = scmp.eq.s32.totalorder %s17, 0
      %p106 = por %p104, %p105
      %p107 = scmp.ne.s32.totalorder %s93, %s94
      %p108 = scmp.eq.s32.totalorder %s18, 1
      %p109 = por %p107, %p108
      %p111 = scmp.ne.s32.totalorder %s94, %s110
      %p112 = scmp.eq.s32.totalorder %s18, 0
      %p113 = por %p111, %p112
      %p114 = scmp.le.s32.totalorder 1, %s12
      %p115 = scmp.lt.s32.totalorder %s12, 3
      %p116 = pnand %p114, %p115
      %p117 = pneg %p116
      // Predicated region
      $region9: #{tpu_custom_call.1} parent=5 // pred_check
        _
      $region10: #{tpu_custom_call.1} parent=5 // pred_check_branch
        %119 = sbr.rel (%p116) target = $region12
      $region11: #{tpu_custom_call.1} parent=5 // pred_region
        %s120 = ssub.s32 %s12, 1
        // Predicated region
        $region13: #{tpu_custom_call.1} parent=11 // pred_check
          %p121 = pneg %p59
        $region14: #{tpu_custom_call.1} parent=11 // pred_check_branch
          %123 = sbr.rel (%p121) target = $region16
        $region15: #{tpu_custom_call.1} parent=11 // pred_region
          _
        $region16: #{tpu_custom_call.1} parent=11 // pred_fallthru
          _
        // Predicated region
        $region17: #{tpu_custom_call.1} parent=11 // pred_check
          %p124 = pneg %p80
        $region18: #{tpu_custom_call.1} parent=11 // pred_check_branch
          %126 = sbr.rel (%p124) target = $region20
        $region19: #{tpu_custom_call.1} parent=11 // pred_region
          _
        $region20: #{tpu_custom_call.1} parent=11 // pred_fallthru
          _
      $region12: #{tpu_custom_call.1} parent=5 // pred_fallthru
        _
      %p127 = scmp.lt.s32.totalorder %s12, 2
      // Predicated region
      $region21: #{tpu_custom_call.1} parent=5 // pred_check
        %p128 = pneg %p127
      $region22: #{tpu_custom_call.1} parent=5 // pred_check_branch
        %130 = sbr.rel (%p128) target = $region24
      $region23: #{tpu_custom_call.1} parent=5 // pred_region
        // Predicated region
        $region25: #{tpu_custom_call.1} parent=23 // pred_check
          %p131 = pneg %p32
        $region26: #{tpu_custom_call.1} parent=23 // pred_check_branch
          %133 = sbr.rel (%p131) target = $region28
        $region27: #{tpu_custom_call.1} parent=23 // pred_region
          %s134 = sand.u32 %s22, 1
          %s135 = scalar_lea.sflag [#allocation3], %s134
          %s136 = sand.u32 %s22, 1
          %s137 = smul.addr %s136, 64
          %s138 = scalar_lea.vmem [#allocation2], %s137
          %s139 = smul.u32 4, %s12
          %s141 = ssub.s32 1024, 1024
          %142 = vsyncadd %s135, %s141
          %s143 = smul.addr %s139, 2
          %s144 = smul.addr %s143, 128
          %s145 = scalar_lea.hbm %s0, %s144
          %s146 = sshll.u32 %s138, 4
          %s147 = int_to_ptr.vmem [resolvable:$true] %s146
          %152 = dma.hbm_to_vmem [thread:$0]  %s145, 1024, %s147, %s135, 128, 128, 8
        $region28: #{tpu_custom_call.1} parent=23 // pred_fallthru
          _
      $region24: #{tpu_custom_call.1} parent=5 // pred_fallthru
        _
      %p153 = scmp.le.s32.totalorder 1, %s12
      %p154 = scmp.lt.s32.totalorder %s12, 3
      %p155 = pnand %p153, %p154
      %p156 = pneg %p155
      // Predicated region
      $region29: #{tpu_custom_call.1} parent=5 // pred_check
        _
      $region30: #{tpu_custom_call.1} parent=5 // pred_check_branch
        %158 = sbr.rel (%p155) target = $region32
      $region31: #{tpu_custom_call.1} parent=5 // pred_region
        %s159 = ssub.s32 %s12, 1
        %s160 = sand.u32 %s25, 1
        %s161 = scalar_lea.sflag [#allocation3], %s160
        %s162 = sand.u32 %s25, 1
        %s163 = smul.addr %s162, 64
        %s164 = scalar_lea.vmem [#allocation2], %s163
        // Predicated region
        $region33: #{tpu_custom_call.1} parent=31 // pred_check
          %p165 = pneg %p38
        $region34: #{tpu_custom_call.1} parent=31 // pred_check_branch
          %167 = sbr.rel (%p165) target = $region36
        $region35: #{tpu_custom_call.1} parent=31 // pred_region
          %168 = dma.done %s161, 1024
        $region36: #{tpu_custom_call.1} parent=31 // pred_fallthru
          _
        %s169 = sand.u32 %s25, 1
        %s170 = scalar_lea.sflag [#allocation3], %s169
        %s171 = sand.u32 %s25, 1
        %s172 = smul.addr %s171, 64
        %s173 = scalar_lea.vmem [#allocation2], %s172
        %p174 = pneg %p38
        %p175 = pneg %p35
        %p176 = pneg %p59
        %p177 = pneg %p56
        %p178 = pneg %p80
        %p179 = pneg %p77
        %p180 = pneg %p106
        %p181 = pneg %p103
        %s182 = smul.u32 4, %s17
        %p183 = scmp.lt.s32.totalorder %s182, 7
        %s184 = scalar_select %p183, %s182, 7
        %s185 = smul.addr %s184, 4
        %s186 = smul.addr %s185, 8
        %s187 = scalar_lea.vmem %s3, %s186
        %s188 = smul.u32 4, %s17
        %s189 = smul.u32 4, %s17
        %p190 = scmp.lt.s32.totalorder %s189, 7
        %s191 = scalar_select %p190, %s189, 7
        %s192 = smul.addr %s191, 4
        %s193 = smul.addr %s192, 8
        %s194 = scalar_lea.vmem %s3, %s193
        %s195 = smul.u32 4, %s17
        %v196 = vld [vmem:[%s164] sm:$0xff]
        %v197 = vld [vmem:[%s164 + $0x8] sm:$0xff]
        %v198 = vld [vmem:[%s164 + $0x10] sm:$0xff]
        %v199 = vld [vmem:[%s164 + $0x18] sm:$0xff]
        %v200 = vld [vmem:[%s164 + $0x20] sm:$0xff]
        %v201 = vld [vmem:[%s164 + $0x28] sm:$0xff]
        %v202 = vld [vmem:[%s164 + $0x30] sm:$0xff]
        %v203 = vld [vmem:[%s164 + $0x38] sm:$0xff]
        %v204 = vld [vmem:[%s1] sm:$0xff]
        %v205 = vld [vmem:[%s1 + $0x8] sm:$0xff]
        %v206 = vld [vmem:[%s1 + $0x10] sm:$0xff]
        %v207 = vld [vmem:[%s1 + $0x18] sm:$0x7f]
        %v208 = vld [vmem:[%s2] sm:$0xff]
        %v209 = vld [vmem:[%s2 + $0x8] sm:$0xff]
        %vm210 = vcmask 130048
        %v212 = vsel %vm210, %v196, 0
        %v215 = vsel %vm210, %v197, 0
        %v218 = vsel %vm210, %v198, 0
        %v221 = vsel %vm210, %v199, 0
        %v224 = vsel %vm210, %v200, 0
        %v227 = vsel %vm210, %v201, 0
        %v230 = vsel %vm210, %v202, 0
        %v233 = vsel %vm210, %v203, 0
        %235 = vmatprep.subr.mxu0 0.0
        %236 = vmatpush1.msra.mxu0 %v208
        %237 = vmatprep.subr.mxu0 0.0
        %238 = vmatpush1.msra.mxu0 %v209
        %239 = vmatprep.subr.mxu0 0.0
        %240 = vmatpush1.msra.mxu0 0.0
        %241 = vmatprep.subr.mxu0 0.0
        %242 = vmatpush1.msra.mxu0 0.0
        %243 = vmatprep.subr.mxu0 0.0
        %244 = vmatpush1.msra.mxu0 0.0
        %245 = vmatprep.subr.mxu0 0.0
        %246 = vmatpush1.msra.mxu0 0.0
        %247 = vmatprep.subr.mxu0 0.0
        %248 = vmatpush1.msra.mxu0 0.0
        %249 = vmatprep.subr.mxu0 0.0
        %250 = vmatpush1.msra.mxu0 0.0
        %251 = vmatprep.subr.mxu0 0.0
        %252 = vmatpush1.msra.mxu0 0.0
        %253 = vmatprep.subr.mxu0 0.0
        %254 = vmatpush1.msra.mxu0 0.0
        %255 = vmatprep.subr.mxu0 0.0
        %256 = vmatpush1.msra.mxu0 0.0
        %257 = vmatprep.subr.mxu0 0.0
        %258 = vmatpush1.msra.mxu0 0.0
        %259 = vmatprep.subr.mxu0 0.0
        %260 = vmatpush1.msra.mxu0 0.0
        %261 = vmatprep.subr.mxu0 0.0
        %262 = vmatpush1.msra.mxu0 0.0
        %263 = vmatprep.subr.mxu0 0.0
        %264 = vmatpush1.msra.mxu0 0.0
        %265 = vmatprep.subr.mxu0 0.0
        %266 = vmatpush1.msra.mxu0 0.0
        %267 = vmatprep.subr.mxu0 0.0
        %268 = vmatpush1.msra.mxu0 0.0
        %269 = vmatprep.subr.mxu0 0.0
        %270 = vmatpush1.msra.mxu0 0.0
        %271 = vmatprep.subr.mxu0 0.0
        %272 = vmatpush1.msra.mxu0 0.0
        %273 = vmatprep.subr.mxu0 0.0
        %274 = vmatpush1.msra.mxu0 0.0
        %275 = vmatprep.subr.mxu0 0.0
        %276 = vmatpush1.msra.mxu0 0.0
        %277 = vmatprep.subr.mxu0 0.0
        %278 = vmatpush1.msra.mxu0 0.0
        %279 = vmatprep.subr.mxu0 0.0
        %280 = vmatpush1.msra.mxu0 0.0
        %281 = vmatprep.subr.mxu0 0.0
        %282 = vmatpush1.msra.mxu0 0.0
        %283 = vmatprep.subr.mxu0 0.0
        %284 = vmatpush1.msra.mxu0 0.0
        %285 = vmatprep.subr.mxu0 0.0
        %286 = vmatpush1.msra.mxu0 0.0
        %287 = vmatprep.subr.mxu0 0.0
        %288 = vmatpush1.msra.mxu0 0.0
        %289 = vmatprep.subr.mxu0 0.0
        %290 = vmatpush1.msra.mxu0 0.0
        %291 = vmatprep.subr.mxu0 0.0
        %292 = vmatpush1.msra.mxu0 0.0
        %293 = vmatprep.subr.mxu0 0.0
        %294 = vmatpush1.msra.mxu0 0.0
        %295 = vmatprep.subr.mxu0 0.0
        %296 = vmatpush1.msra.mxu0 0.0
        %297 = vmatprep.subr.mxu0 0.0
        %298 = vmatpush1.msra.mxu0 0.0
        %299 = vmatprep.mubr.f32.mxu0 0.0
        %300 = vmatmul.mubr.f32.gmra.mrb[0].mxu0 %v212
        %v301 = vpop.f32.mrb[0].mxu0
        %v302 = vadd.f32 0.0, %v301
        %v303 = vpop.f32.mrb[0].mxu0
        %304 = vmatprep.mubr.f32.mxu0 0.0
        %305 = vmatmul.mubr.f32.gmra.mrb[0].mxu0 %v215
        %v306 = vpop.f32.mrb[0].mxu0
        %v307 = vadd.f32 0.0, %v306
        %v308 = vpop.f32.mrb[0].mxu0
        %309 = vmatprep.mubr.f32.mxu0 0.0
        %310 = vmatmul.mubr.f32.gmra.mrb[0].mxu0 %v218
        %v311 = vpop.f32.mrb[0].mxu0
        %v312 = vadd.f32 0.0, %v311
        %v313 = vpop.f32.mrb[0].mxu0
        %314 = vmatprep.mubr.f32.mxu0 0.0
        %315 = vmatmul.mubr.f32.gmra.mrb[0].mxu0 %v221
        %v316 = vpop.f32.mrb[0].mxu0
        %v317 = vadd.f32 0.0, %v316
        %v318 = vpop.f32.mrb[0].mxu0
        %319 = vmatprep.mubr.f32.mxu0 0.0
        %320 = vmatmul.mubr.f32.gmra.mrb[0].mxu0 %v224
        %v321 = vpop.f32.mrb[0].mxu0
        %v322 = vadd.f32 0.0, %v321
        %v323 = vpop.f32.mrb[0].mxu0
        %324 = vmatprep.mubr.f32.mxu0 0.0
        %325 = vmatmul.mubr.f32.gmra.mrb[0].mxu0 %v227
        %v326 = vpop.f32.mrb[0].mxu0
        %v327 = vadd.f32 0.0, %v326
        %v328 = vpop.f32.mrb[0].mxu0
        %329 = vmatprep.mubr.f32.mxu0 0.0
        %330 = vmatmul.mubr.f32.gmra.mrb[0].mxu0 %v230
        %v331 = vpop.f32.mrb[0].mxu0
        %v332 = vadd.f32 0.0, %v331
        %v333 = vpop.f32.mrb[0].mxu0
        %334 = vmatprep.mubr.f32.mxu0 0.0
        %335 = vmatmul.mubr.f32.gmra.mrb[0].mxu0 %v233
        %v336 = vpop.f32.mrb[0].mxu0
        %v337 = vadd.f32 0.0, %v336
        %v338 = vpop.f32.mrb[0].mxu0
        %339 = vdwg.mxu0
        %v341 = vsel %vm210, %v204, 0
        %v344 = vsel %vm210, %v205, 0
        %v347 = vsel %vm210, %v206, 0
        %v350 = vsel %vm210, %v207, 0
        %352 = vmatprep.subr.mxu0 0.0
        %353 = vmatpush1.msra.mxu0 %v302
        %354 = vmatprep.subr.mxu0 0.0
        %355 = vmatpush1.msra.mxu0 %v307
        %356 = vmatprep.subr.mxu0 0.0
        %357 = vmatpush1.msra.mxu0 0.0
        %358 = vmatprep.subr.mxu0 0.0
        %359 = vmatpush1.msra.mxu0 0.0
        %360 = vmatprep.subr.mxu0 0.0
        %361 = vmatpush1.msra.mxu0 0.0
        %362 = vmatprep.subr.mxu0 0.0
        %363 = vmatpush1.msra.mxu0 0.0
        %364 = vmatprep.subr.mxu0 0.0
        %365 = vmatpush1.msra.mxu0 0.0
        %366 = vmatprep.subr.mxu0 0.0
        %367 = vmatpush1.msra.mxu0 0.0
        %368 = vmatprep.subr.mxu0 0.0
        %369 = vmatpush1.msra.mxu0 0.0
        %370 = vmatprep.subr.mxu0 0.0
        %371 = vmatpush1.msra.mxu0 0.0
        %372 = vmatprep.subr.mxu0 0.0
        %373 = vmatpush1.msra.mxu0 0.0
        %374 = vmatprep.subr.mxu0 0.0
        %375 = vmatpush1.msra.mxu0 0.0
        %376 = vmatprep.subr.mxu0 0.0
        %377 = vmatpush1.msra.mxu0 0.0
        %378 = vmatprep.subr.mxu0 0.0
        %379 = vmatpush1.msra.mxu0 0.0
        %380 = vmatprep.subr.mxu0 0.0
        %381 = vmatpush1.msra.mxu0 0.0
        %382 = vmatprep.subr.mxu0 0.0
        %383 = vmatpush1.msra.mxu0 0.0
        %384 = vmatprep.subr.mxu0 0.0
        %385 = vmatpush1.msra.mxu0 0.0
        %386 = vmatprep.subr.mxu0 0.0
        %387 = vmatpush1.msra.mxu0 0.0
        %388 = vmatprep.subr.mxu0 0.0
        %389 = vmatpush1.msra.mxu0 0.0
        %390 = vmatprep.subr.mxu0 0.0
        %391 = vmatpush1.msra.mxu0 0.0
        %392 = vmatprep.subr.mxu0 0.0
        %393 = vmatpush1.msra.mxu0 0.0
        %394 = vmatprep.subr.mxu0 0.0
        %395 = vmatpush1.msra.mxu0 0.0
        %396 = vmatprep.subr.mxu0 0.0
        %397 = vmatpush1.msra.mxu0 0.0
        %398 = vmatprep.subr.mxu0 0.0
        %399 = vmatpush1.msra.mxu0 0.0
        %400 = vmatprep.subr.mxu0 0.0
        %401 = vmatpush1.msra.mxu0 0.0
        %402 = vmatprep.subr.mxu0 0.0
        %403 = vmatpush1.msra.mxu0 0.0
        %404 = vmatprep.subr.mxu0 0.0
        %405 = vmatpush1.msra.mxu0 0.0
        %406 = vmatprep.subr.mxu0 0.0
        %407 = vmatpush1.msra.mxu0 0.0
        %408 = vmatprep.subr.mxu0 0.0
        %409 = vmatpush1.msra.mxu0 0.0
        %410 = vmatprep.subr.mxu0 0.0
        %411 = vmatpush1.msra.mxu0 0.0
        %412 = vmatprep.subr.mxu0 0.0
        %413 = vmatpush1.msra.mxu0 0.0
        %414 = vmatprep.subr.mxu0 0.0
        %415 = vmatpush1.msra.mxu0 0.0
        %416 = vmatprep.mubr.f32.mxu0 0.0
        %417 = vmatmul.mubr.f32.gmra.mrb[0].mxu0 %v341
        %v418 = vpop.f32.mrb[0].mxu0
        %v419 = vadd.f32 0.0, %v418
        %v420 = vpop.f32.mrb[0].mxu0
        %421 = vmatprep.mubr.f32.mxu0 0.0
        %422 = vmatmul.mubr.f32.gmra.mrb[0].mxu0 %v344
        %v423 = vpop.f32.mrb[0].mxu0
        %v424 = vadd.f32 0.0, %v423
        %v425 = vpop.f32.mrb[0].mxu0
        %426 = vmatprep.mubr.f32.mxu0 0.0
        %427 = vmatmul.mubr.f32.gmra.mrb[0].mxu0 %v347
        %v428 = vpop.f32.mrb[0].mxu0
        %v429 = vadd.f32 0.0, %v428
        %v430 = vpop.f32.mrb[0].mxu0
        %431 = vmatprep.mubr.f32.mxu0 0.0
        %432 = vmatmul.mubr.f32.gmra.mrb[0].mxu0 %v350
        %v433 = vpop.f32.mrb[0].mxu0
        %v434 = vadd.f32 0.0, %v433
        %v435 = vpop.f32.mrb[0].mxu0
        %436 = vdwg.mxu0
        %437 = vmatprep.subr.mxu0 0.0
        %438 = vmatpush1.msra.mxu0 %v312
        %439 = vmatprep.subr.mxu0 0.0
        %440 = vmatpush1.msra.mxu0 %v317
        %441 = vmatprep.subr.mxu0 0.0
        %442 = vmatpush1.msra.mxu0 0.0
        %443 = vmatprep.subr.mxu0 0.0
        %444 = vmatpush1.msra.mxu0 0.0
        %445 = vmatprep.subr.mxu0 0.0
        %446 = vmatpush1.msra.mxu0 0.0
        %447 = vmatprep.subr.mxu0 0.0
        %448 = vmatpush1.msra.mxu0 0.0
        %449 = vmatprep.subr.mxu0 0.0
        %450 = vmatpush1.msra.mxu0 0.0
        %451 = vmatprep.subr.mxu0 0.0
        %452 = vmatpush1.msra.mxu0 0.0
        %453 = vmatprep.subr.mxu0 0.0
        %454 = vmatpush1.msra.mxu0 0.0
        %455 = vmatprep.subr.mxu0 0.0
        %456 = vmatpush1.msra.mxu0 0.0
        %457 = vmatprep.subr.mxu0 0.0
        %458 = vmatpush1.msra.mxu0 0.0
        %459 = vmatprep.subr.mxu0 0.0
        %460 = vmatpush1.msra.mxu0 0.0
        %461 = vmatprep.subr.mxu0 0.0
        %462 = vmatpush1.msra.mxu0 0.0
        %463 = vmatprep.subr.mxu0 0.0
        %464 = vmatpush1.msra.mxu0 0.0
        %465 = vmatprep.subr.mxu0 0.0
        %466 = vmatpush1.msra.mxu0 0.0
        %467 = vmatprep.subr.mxu0 0.0
        %468 = vmatpush1.msra.mxu0 0.0
        %469 = vmatprep.subr.mxu0 0.0
        %470 = vmatpush1.msra.mxu0 0.0
        %471 = vmatprep.subr.mxu0 0.0
        %472 = vmatpush1.msra.mxu0 0.0
        %473 = vmatprep.subr.mxu0 0.0
        %474 = vmatpush1.msra.mxu0 0.0
        %475 = vmatprep.subr.mxu0 0.0
        %476 = vmatpush1.msra.mxu0 0.0
        %477 = vmatprep.subr.mxu0 0.0
        %478 = vmatpush1.msra.mxu0 0.0
        %479 = vmatprep.subr.mxu0 0.0
        %480 = vmatpush1.msra.mxu0 0.0
        %481 = vmatprep.subr.mxu0 0.0
        %482 = vmatpush1.msra.mxu0 0.0
        %483 = vmatprep.subr.mxu0 0.0
        %484 = vmatpush1.msra.mxu0 0.0
        %485 = vmatprep.subr.mxu0 0.0
        %486 = vmatpush1.msra.mxu0 0.0
        %487 = vmatprep.subr.mxu0 0.0
        %488 = vmatpush1.msra.mxu0 0.0
        %489 = vmatprep.subr.mxu0 0.0
        %490 = vmatpush1.msra.mxu0 0.0
        %491 = vmatprep.subr.mxu0 0.0
        %492 = vmatpush1.msra.mxu0 0.0
        %493 = vmatprep.subr.mxu0 0.0
        %494 = vmatpush1.msra.mxu0 0.0
        %495 = vmatprep.subr.mxu0 0.0
        %496 = vmatpush1.msra.mxu0 0.0
        %497 = vmatprep.subr.mxu0 0.0
        %498 = vmatpush1.msra.mxu0 0.0
        %499 = vmatprep.subr.mxu0 0.0
        %500 = vmatpush1.msra.mxu0 0.0
        %501 = vmatprep.mubr.f32.mxu0 0.0
        %502 = vmatmul.mubr.f32.gmra.mrb[0].mxu0 %v341
        %v503 = vpop.f32.mrb[0].mxu0
        %v504 = vadd.f32 0.0, %v503
        %v505 = vpop.f32.mrb[0].mxu0
        %506 = vmatprep.mubr.f32.mxu0 0.0
        %507 = vmatmul.mubr.f32.gmra.mrb[0].mxu0 %v344
        %v508 = vpop.f32.mrb[0].mxu0
        %v509 = vadd.f32 0.0, %v508
        %v510 = vpop.f32.mrb[0].mxu0
        %511 = vmatprep.mubr.f32.mxu0 0.0
        %512 = vmatmul.mubr.f32.gmra.mrb[0].mxu0 %v347
        %v513 = vpop.f32.mrb[0].mxu0
        %v514 = vadd.f32 0.0, %v513
        %v515 = vpop.f32.mrb[0].mxu0
        %516 = vmatprep.mubr.f32.mxu0 0.0
        %517 = vmatmul.mubr.f32.gmra.mrb[0].mxu0 %v350
        %v518 = vpop.f32.mrb[0].mxu0
        %v519 = vadd.f32 0.0, %v518
        %v520 = vpop.f32.mrb[0].mxu0
        %521 = vdwg.mxu0
        %522 = vmatprep.subr.mxu0 0.0
        %523 = vmatpush1.msra.mxu0 %v322
        %524 = vmatprep.subr.mxu0 0.0
        %525 = vmatpush1.msra.mxu0 %v327
        %526 = vmatprep.subr.mxu0 0.0
        %527 = vmatpush1.msra.mxu0 0.0
        %528 = vmatprep.subr.mxu0 0.0
        %529 = vmatpush1.msra.mxu0 0.0
        %530 = vmatprep.subr.mxu0 0.0
        %531 = vmatpush1.msra.mxu0 0.0
        %532 = vmatprep.subr.mxu0 0.0
        %533 = vmatpush1.msra.mxu0 0.0
        %534 = vmatprep.subr.mxu0 0.0
        %535 = vmatpush1.msra.mxu0 0.0
        %536 = vmatprep.subr.mxu0 0.0
        %537 = vmatpush1.msra.mxu0 0.0
        %538 = vmatprep.subr.mxu0 0.0
        %539 = vmatpush1.msra.mxu0 0.0
        %540 = vmatprep.subr.mxu0 0.0
        %541 = vmatpush1.msra.mxu0 0.0
        %542 = vmatprep.subr.mxu0 0.0
        %543 = vmatpush1.msra.mxu0 0.0
        %544 = vmatprep.subr.mxu0 0.0
        %545 = vmatpush1.msra.mxu0 0.0
        %546 = vmatprep.subr.mxu0 0.0
        %547 = vmatpush1.msra.mxu0 0.0
        %548 = vmatprep.subr.mxu0 0.0
        %549 = vmatpush1.msra.mxu0 0.0
        %550 = vmatprep.subr.mxu0 0.0
        %551 = vmatpush1.msra.mxu0 0.0
        %552 = vmatprep.subr.mxu0 0.0
        %553 = vmatpush1.msra.mxu0 0.0
        %554 = vmatprep.subr.mxu0 0.0
        %555 = vmatpush1.msra.mxu0 0.0
        %556 = vmatprep.subr.mxu0 0.0
        %557 = vmatpush1.msra.mxu0 0.0
        %558 = vmatprep.subr.mxu0 0.0
        %559 = vmatpush1.msra.mxu0 0.0
        %560 = vmatprep.subr.mxu0 0.0
        %561 = vmatpush1.msra.mxu0 0.0
        %562 = vmatprep.subr.mxu0 0.0
        %563 = vmatpush1.msra.mxu0 0.0
        %564 = vmatprep.subr.mxu0 0.0
        %565 = vmatpush1.msra.mxu0 0.0
        %566 = vmatprep.subr.mxu0 0.0
        %567 = vmatpush1.msra.mxu0 0.0
        %568 = vmatprep.subr.mxu0 0.0
        %569 = vmatpush1.msra.mxu0 0.0
        %570 = vmatprep.subr.mxu0 0.0
        %571 = vmatpush1.msra.mxu0 0.0
        %572 = vmatprep.subr.mxu0 0.0
        %573 = vmatpush1.msra.mxu0 0.0
        %574 = vmatprep.subr.mxu0 0.0
        %575 = vmatpush1.msra.mxu0 0.0
        %576 = vmatprep.subr.mxu0 0.0
        %577 = vmatpush1.msra.mxu0 0.0
        %578 = vmatprep.subr.mxu0 0.0
        %579 = vmatpush1.msra.mxu0 0.0
        %580 = vmatprep.subr.mxu0 0.0
        %581 = vmatpush1.msra.mxu0 0.0
        %582 = vmatprep.subr.mxu0 0.0
        %583 = vmatpush1.msra.mxu0 0.0
        %584 = vmatprep.subr.mxu0 0.0
        %585 = vmatpush1.msra.mxu0 0.0
        %586 = vmatprep.mubr.f32.mxu0 0.0
        %587 = vmatmul.mubr.f32.gmra.mrb[0].mxu0 %v341
        %v588 = vpop.f32.mrb[0].mxu0
        %v589 = vadd.f32 0.0, %v588
        %v590 = vpop.f32.mrb[0].mxu0
        %591 = vmatprep.mubr.f32.mxu0 0.0
        %592 = vmatmul.mubr.f32.gmra.mrb[0].mxu0 %v344
        %v593 = vpop.f32.mrb[0].mxu0
        %v594 = vadd.f32 0.0, %v593
        %v595 = vpop.f32.mrb[0].mxu0
        %596 = vmatprep.mubr.f32.mxu0 0.0
        %597 = vmatmul.mubr.f32.gmra.mrb[0].mxu0 %v347
        %v598 = vpop.f32.mrb[0].mxu0
        %v599 = vadd.f32 0.0, %v598
        %v600 = vpop.f32.mrb[0].mxu0
        %601 = vmatprep.mubr.f32.mxu0 0.0
        %602 = vmatmul.mubr.f32.gmra.mrb[0].mxu0 %v350
        %v603 = vpop.f32.mrb[0].mxu0
        %v604 = vadd.f32 0.0, %v603
        %v605 = vpop.f32.mrb[0].mxu0
        %606 = vdwg.mxu0
        %607 = vmatprep.subr.mxu0 0.0
        %608 = vmatpush1.msra.mxu0 %v332
        %609 = vmatprep.subr.mxu0 0.0
        %610 = vmatpush1.msra.mxu0 %v337
        %611 = vmatprep.subr.mxu0 0.0
        %612 = vmatpush1.msra.mxu0 0.0
        %613 = vmatprep.subr.mxu0 0.0
        %614 = vmatpush1.msra.mxu0 0.0
        %615 = vmatprep.subr.mxu0 0.0
        %616 = vmatpush1.msra.mxu0 0.0
        %617 = vmatprep.subr.mxu0 0.0
        %618 = vmatpush1.msra.mxu0 0.0
        %619 = vmatprep.subr.mxu0 0.0
        %620 = vmatpush1.msra.mxu0 0.0
        %621 = vmatprep.subr.mxu0 0.0
        %622 = vmatpush1.msra.mxu0 0.0
        %623 = vmatprep.subr.mxu0 0.0
        %624 = vmatpush1.msra.mxu0 0.0
        %625 = vmatprep.subr.mxu0 0.0
        %626 = vmatpush1.msra.mxu0 0.0
        %627 = vmatprep.subr.mxu0 0.0
        %628 = vmatpush1.msra.mxu0 0.0
        %629 = vmatprep.subr.mxu0 0.0
        %630 = vmatpush1.msra.mxu0 0.0
        %631 = vmatprep.subr.mxu0 0.0
        %632 = vmatpush1.msra.mxu0 0.0
        %633 = vmatprep.subr.mxu0 0.0
        %634 = vmatpush1.msra.mxu0 0.0
        %635 = vmatprep.subr.mxu0 0.0
        %636 = vmatpush1.msra.mxu0 0.0
        %637 = vmatprep.subr.mxu0 0.0
        %638 = vmatpush1.msra.mxu0 0.0
        %639 = vmatprep.subr.mxu0 0.0
        %640 = vmatpush1.msra.mxu0 0.0
        %641 = vmatprep.subr.mxu0 0.0
        %642 = vmatpush1.msra.mxu0 0.0
        %643 = vmatprep.subr.mxu0 0.0
        %644 = vmatpush1.msra.mxu0 0.0
        %645 = vmatprep.subr.mxu0 0.0
        %646 = vmatpush1.msra.mxu0 0.0
        %647 = vmatprep.subr.mxu0 0.0
        %648 = vmatpush1.msra.mxu0 0.0
        %649 = vmatprep.subr.mxu0 0.0
        %650 = vmatpush1.msra.mxu0 0.0
        %651 = vmatprep.subr.mxu0 0.0
        %652 = vmatpush1.msra.mxu0 0.0
        %653 = vmatprep.subr.mxu0 0.0
        %654 = vmatpush1.msra.mxu0 0.0
        %655 = vmatprep.subr.mxu0 0.0
        %656 = vmatpush1.msra.mxu0 0.0
        %657 = vmatprep.subr.mxu0 0.0
        %658 = vmatpush1.msra.mxu0 0.0
        %659 = vmatprep.subr.mxu0 0.0
        %660 = vmatpush1.msra.mxu0 0.0
        %661 = vmatprep.subr.mxu0 0.0
        %662 = vmatpush1.msra.mxu0 0.0
        %663 = vmatprep.subr.mxu0 0.0
        %664 = vmatpush1.msra.mxu0 0.0
        %665 = vmatprep.subr.mxu0 0.0
        %666 = vmatpush1.msra.mxu0 0.0
        %667 = vmatprep.subr.mxu0 0.0
        %668 = vmatpush1.msra.mxu0 0.0
        %669 = vmatprep.subr.mxu0 0.0
        %670 = vmatpush1.msra.mxu0 0.0
        %671 = vmatprep.mubr.f32.mxu0 0.0
        %672 = vmatmul.mubr.f32.gmra.mrb[0].mxu0 %v341
        %v673 = vpop.f32.mrb[0].mxu0
        %v674 = vadd.f32 0.0, %v673
        %v675 = vpop.f32.mrb[0].mxu0
        %676 = vmatprep.mubr.f32.mxu0 0.0
        %677 = vmatmul.mubr.f32.gmra.mrb[0].mxu0 %v344
        %v678 = vpop.f32.mrb[0].mxu0
        %v679 = vadd.f32 0.0, %v678
        %v680 = vpop.f32.mrb[0].mxu0
        %681 = vmatprep.mubr.f32.mxu0 0.0
        %682 = vmatmul.mubr.f32.gmra.mrb[0].mxu0 %v347
        %v683 = vpop.f32.mrb[0].mxu0
        %v684 = vadd.f32 0.0, %v683
        %v685 = vpop.f32.mrb[0].mxu0
        %686 = vmatprep.mubr.f32.mxu0 0.0
        %687 = vmatmul.mubr.f32.gmra.mrb[0].mxu0 %v350
        %v688 = vpop.f32.mrb[0].mxu0
        %v689 = vadd.f32 0.0, %v688
        %v690 = vpop.f32.mrb[0].mxu0
        %691 = vdwg.mxu0
        %vm692 = vcmask 252928
        %693 = vst.msk [vmem:[%s194] sm:$0xff] %vm692, %v419
        %694 = vst.msk [vmem:[%s194 + $0x8] sm:$0xff] %vm692, %v424
        %695 = vst.msk [vmem:[%s194 + $0x10] sm:$0xff] %vm692, %v429
        %vm696 = vcmask 251904
        %697 = vst.msk [vmem:[%s194 + $0x18] sm:$0x7f] %vm696, %v434
        %698 = vst.msk [vmem:[%s194 + $0x20] sm:$0xff] %vm692, %v504
        %699 = vst.msk [vmem:[%s194 + $0x28] sm:$0xff] %vm692, %v509
        %700 = vst.msk [vmem:[%s194 + $0x30] sm:$0xff] %vm692, %v514
        %701 = vst.msk [vmem:[%s194 + $0x38] sm:$0x7f] %vm696, %v519
        %702 = vst.msk [vmem:[%s194 + $0x40] sm:$0xff] %vm692, %v589
        %703 = vst.msk [vmem:[%s194 + $0x48] sm:$0xff] %vm692, %v594
        %704 = vst.msk [vmem:[%s194 + $0x50] sm:$0xff] %vm692, %v599
        %705 = vst.msk [vmem:[%s194 + $0x58] sm:$0x7f] %vm696, %v604
        %706 = vst.msk [vmem:[%s194 + $0x60] sm:$0xff] %vm692, %v674
        %707 = vst.msk [vmem:[%s194 + $0x68] sm:$0xff] %vm692, %v679
        %708 = vst.msk [vmem:[%s194 + $0x70] sm:$0xff] %vm692, %v684
        %709 = vst.msk [vmem:[%s194 + $0x78] sm:$0x7f] %vm696, %v689
        %s710 = smul.u32 4, %s17
        %p711 = scmp.lt.s32.totalorder %s710, 7
        %s712 = scalar_select %p711, %s710, 7
        %s713 = smul.addr %s712, 4
        %s714 = smul.addr %s713, 8
        %s715 = scalar_lea.vmem %s3, %s714
        // Predicated region
        $region37: #{tpu_custom_call.1} parent=31 // pred_check
          %p716 = pneg %p103
        $region38: #{tpu_custom_call.1} parent=31 // pred_check_branch
          %718 = sbr.rel (%p716) target = $region40
        $region39: #{tpu_custom_call.1} parent=31 // pred_region
          %s719 = smul.u32 4, %s17
        $region40: #{tpu_custom_call.1} parent=31 // pred_fallthru
          _
      $region32: #{tpu_custom_call.1} parent=5 // pred_fallthru
        _
      %p720 = scmp.le.s32.totalorder 2, %s12
      // Predicated region
      $region41: #{tpu_custom_call.1} parent=5 // pred_check
        %p721 = pneg %p720
      $region42: #{tpu_custom_call.1} parent=5 // pred_check_branch
        %723 = sbr.rel (%p721) target = $region44
      $region43: #{tpu_custom_call.1} parent=5 // pred_region
        %s724 = ssub.s32 %s12, 2
        // Predicated region
        $region45: #{tpu_custom_call.1} parent=43 // pred_check
          %p725 = pneg %p109
        $region46: #{tpu_custom_call.1} parent=43 // pred_check_branch
          %727 = sbr.rel (%p725) target = $region48
        $region47: #{tpu_custom_call.1} parent=43 // pred_region
          %s728 = smul.u32 4, %s18
          %p729 = scmp.lt.s32.totalorder %s728, 7
          %s730 = scalar_select %p729, %s728, 7
          %s731 = smul.addr %s730, 4
          %s732 = smul.addr %s731, 8
          %s733 = scalar_lea.vmem %s3, %s732
        $region48: #{tpu_custom_call.1} parent=43 // pred_fallthru
          _
      $region44: #{tpu_custom_call.1} parent=5 // pred_fallthru
        _
    $region6: #{tpu_custom_call.1} parent=1 // loop_footer
      %s16 = sadd.s32 1, %s12
    $region7: #{tpu_custom_call.1} parent=1 // loop_footer_branch
      %11 = sbr.rel target = $region3
    $region8: #{tpu_custom_call.1} parent=1 // loop_exit
      _
    %734 = vsyncpa [#allocation3], 1
    %s735 = scalar_lea.sflag [#allocation3], 1
    %736 = vsyncpa %s735, 1

</llo_original>
